<compile_context>
chip_gen: v7x
topology: tpu7x:2x2x1
jax: 0.10.0
libtpu: 0.0.40
codegen_flags: <defaults>
</compile_context>

<pallas_src>
import functools

import jax
import jax.numpy as jnp
import numpy as np
from jax.experimental import pallas as pl
from jax.experimental.pallas import tpu as pltpu

BN_EPS = 1e-5
_PCOLS = 16  # packed per-channel params: cols 0..8 = 3x3 taps, 9 = gamma, 10 = beta

# Tap order matches PyTorch conv weight layout: t = ki*3 + kj, offset (ki-1, kj-1).
_TAPS = tuple((di, dj) for di in (-1, 0, 1) for dj in (-1, 0, 1))


def _gcs_kernel(x_ref, p_ref, o_ref, *, H, W):
    """One channel-block step.

    x_ref: (B, C_blk, H*W)  input block, spatial flattened onto the lane axis
    p_ref: (C_blk, 16)      packed per-channel params (9 taps, gamma, beta)
    o_ref: (B, C_blk, H*W)  output block
    """
    B, C_blk, HW = x_ref.shape

    x = x_ref[...].astype(jnp.float32)                      # (B, C_blk, HW)
    p = p_ref[...].astype(jnp.float32)                      # (C_blk, 16)

    # Halo validity predicates, rebuilt from a lane iota (padding=1, zero pad).
    lane = jax.lax.broadcasted_iota(jnp.int32, (1, HW), 1)
    col = lane % W
    row_ok_up = lane >= W                     # i - 1 >= 0
    row_ok_down = lane < (H - 1) * W          # i + 1 <= H - 1
    col_ok_left = col >= 1                    # j - 1 >= 0
    col_ok_right = col <= W - 2               # j + 1 <= W - 1

    def tap_mask(di, dj):
        m = None
        for cond, need in ((row_ok_up, di == -1), (row_ok_down, di == 1),
                           (col_ok_left, dj == -1), (col_ok_right, dj == 1)):
            if need:
                m = cond if m is None else (m & cond)
        return m

    # Depthwise 3x3 conv.  Center tap first (mask-free), then the 8 shifted
    # neighbour taps.  The halo mask is folded into the per-channel tap weight
    # once per tap (a (C_blk, HW) slab), so the per-element hot-path update is
    # a single mul + add broadcast over B.  The rolls run on the XLU slot and
    # co-issue with the VPU multiply-adds.
    acc = x * p[None, :, 4:5]                                # center tap (0, 0)
    for t, (di, dj) in enumerate(_TAPS):
        if di == 0 and dj == 0:
            continue
        off = di * W + dj                                    # flat-index offset
        mw = tap_mask(di, dj).astype(jnp.float32) * p[:, t:t + 1]   # (C_blk, HW)
        shifted = pltpu.roll(x, shift=(-off) % HW, axis=2)   # shifted[q] = x[q + off]
        acc = acc + shifted * mw[None, :, :]

    # BatchNorm2d (training-mode batch stats) over (B, H, W): centered two-pass
    # variance (no E[x^2]-E[x]^2 cancellation), then affine + ReLU.
    inv_n = 1.0 / float(B * HW)
    mean = jnp.sum(acc, axis=(0, 2), keepdims=True) * inv_n  # (1, C_blk, 1)
    d = acc - mean
    var = jnp.sum(d * d, axis=(0, 2), keepdims=True) * inv_n
    scale = p[None, :, 9:10] * jax.lax.rsqrt(var + BN_EPS)   # gamma / std
    y = jnp.maximum(d * scale + p[None, :, 10:11], 0.0)      # + beta, ReLU
    o_ref[...] = y.astype(o_ref.dtype)


def _choose_c_blk(B, C_pad, HW, itemsize):
    """Largest sublane-dense channel block (multiple of 8, divides C_pad) whose
    estimated VMEM working set fits the per-step budget, capped so the channel
    grid keeps multiple steps (megacore sharding + double-buffered pipeline)."""
    # Double-buffered in + out blocks (4*itemsize) + ~4 live f32 temporaries.
    per_chan = B * HW * (4 * itemsize + 16)
    budget = 24 << 20                     # <= ~24 MiB per step under a 48 MiB limit
    if C_pad >= 32:
        max_blk = C_pad // 4              # >= 4 grid steps
    elif C_pad >= 16:
        max_blk = C_pad // 2              # >= 2 grid steps
    else:
        max_blk = C_pad                   # tiny problem: single step is unavoidable
    best = 8
    for cand in range(8, max_blk + 1, 8):
        if C_pad % cand == 0 and cand * per_chan <= budget:
            best = cand
    return best


def group_conv_shuffle(x, w, gamma, beta):
    """x: (B, C, H, W); w: (C, 1, 3, 3) depthwise weights; gamma/beta: (C,) BN affine."""
    B, C, H, W = x.shape
    HW = H * W

    # Pad channels up to a multiple of 8 so every block is a dense sublane tile
    # and the grid math is exact.  Padded channels (zero input, zero weights,
    # zero beta) produce zeros and are sliced off below.
    C_pad = ((C + 7) // 8) * 8

    x_flat = x.reshape(B, C, HW)                             # contiguous collapse
    if C_pad != C:
        x_flat = jnp.pad(x_flat, ((0, 0), (0, C_pad - C), (0, 0)))

    # Single packed per-channel param operand: [w00..w22, gamma, beta, 0...].
    params = jnp.zeros((C_pad, _PCOLS), dtype=jnp.float32)
    params = params.at[:C, 0:9].set(w.reshape(C, 9).astype(jnp.float32))
    params = params.at[:C, 9].set(gamma.astype(jnp.float32))
    params = params.at[:C, 10].set(beta.astype(jnp.float32))

    c_blk = _choose_c_blk(B, C_pad, HW, x.dtype.itemsize)
    grid = (C_pad // c_blk,)

    kernel = functools.partial(_gcs_kernel, H=H, W=W)

    out = pl.pallas_call(
        kernel,
        out_shape=jax.ShapeDtypeStruct((B, C_pad, HW), x.dtype),
        grid=grid,
        in_specs=[
            pl.BlockSpec((B, c_blk, HW), lambda cb: (0, cb, 0)),
            pl.BlockSpec((c_blk, _PCOLS), lambda cb: (cb, 0)),
        ],
        out_specs=pl.BlockSpec((B, c_blk, HW), lambda cb: (0, cb, 0)),
        compiler_params=pltpu.CompilerParams(
            dimension_semantics=("parallel",),
            vmem_limit_bytes=48 << 20,
        ),
    )(x_flat, params)

    # shuffle_channels with groups == in_channels is the identity permutation,
    # so only the (free) reshape back to NCHW remains.
    return out[:, :C, :].reshape(B, C, H, W)


def _reference(x, w, gamma, beta):
    B, C, H, W = x.shape
    xp = jnp.pad(x, ((0, 0), (0, 0), (1, 1), (1, 1)))
    conv = jnp.zeros_like(x)
    for ki in range(3):
        for kj in range(3):
            conv = conv + xp[:, :, ki:ki + H, kj:kj + W] * \
                w[:, 0, ki, kj][None, :, None, None]
    mean = jnp.mean(conv, axis=(0, 2, 3), keepdims=True)
    var = jnp.mean((conv - mean) ** 2, axis=(0, 2, 3), keepdims=True)
    y = (conv - mean) * jax.lax.rsqrt(var + BN_EPS)
    y = y * gamma[None, :, None, None] + beta[None, :, None, None]
    return jnp.maximum(y, 0.0)


def _run_case(key, B, C, H, W):
    kx, kw, kg, kb = jax.random.split(key, 4)
    x = jax.random.normal(kx, (B, C, H, W), dtype=jnp.float32)
    # Conv2d(in=C, out=C, k=3, groups=C, bias=False) -> weight shape (C, 1, 3, 3)
    w = jax.random.normal(kw, (C, 1, 3, 3), dtype=jnp.float32) * 0.1
    gamma = 1.0 + 0.1 * jax.random.normal(kg, (C,), dtype=jnp.float32)
    beta = 0.1 * jax.random.normal(kb, (C,), dtype=jnp.float32)

    out = jax.block_until_ready(group_conv_shuffle(x, w, gamma, beta))
    ref = _reference(x, w, gamma, beta)
    np.testing.assert_allclose(np.asarray(out), np.asarray(ref),
                               rtol=1e-5, atol=1e-5)


if __name__ == "__main__":
    key = jax.random.PRNGKey(0)
    k1, k2 = jax.random.split(key)
    # Shapes implied by the module (NCHW, groups == in_channels).
    _run_case(k1, B=2, C=4, H=16, W=16)    # small-C path (channels padded to 8)
    _run_case(k2, B=2, C=16, H=16, W=16)   # multi-block grid path (c_blk=8, 2 steps)
    print("KERNEL_OK")
</pallas_src>

<mosaic_0001>
module attributes {stable_mosaic.version = 11 : i64} {
  func.func @_gcs_kernel(%arg0: i32, %arg1: memref<2x8x256xf32, #tpu.memory_space<vmem>>, %arg2: memref<8x16xf32, #tpu.memory_space<vmem>>, %arg3: memref<2x8x256xf32, #tpu.memory_space<vmem>>) attributes {dimension_semantics = [#tpu.dimension_semantics<parallel>], iteration_bounds = array<i64: 1>, scalar_prefetch = 0 : i64, scratch_operands = 0 : i64, tpu.core_type = #tpu.core_type<tc>, window_params = [{transform_indices = @transform_0, window_bounds = array<i64: 2, 8, 256>}, {transform_indices = @transform_1, window_bounds = array<i64: 8, 16>}, {transform_indices = @transform_2, window_bounds = array<i64: 2, 8, 256>}]} {
    %c0 = arith.constant 0 : index
    %c0_0 = arith.constant 0 : index
    %c0_1 = arith.constant 0 : index
    %0 = vector.load %arg1[%c0, %c0_0, %c0_1] : memref<2x8x256xf32, #tpu.memory_space<vmem>>, vector<2x8x256xf32>
    %c0_2 = arith.constant 0 : index
    %c0_3 = arith.constant 0 : index
    %1 = vector.load %arg2[%c0_2, %c0_3] : memref<8x16xf32, #tpu.memory_space<vmem>>, vector<8x16xf32>
    %2 = tpu.iota {dimensions = array<i32: 1>} : vector<1x256xi32>
    %c16_i32 = arith.constant 16 : i32
    %c0_i32 = arith.constant 0 : i32
    %3 = arith.cmpi eq, %c16_i32, %c0_i32 : i32
    %c1_i32 = arith.constant 1 : i32
    %4 = arith.select %3, %c1_i32, %c16_i32 : i32
    %5 = vector.broadcast %4 : i32 to vector<1x256xi32>
    %6 = arith.remsi %2, %5 : vector<1x256xi32>
    %c0_i32_4 = arith.constant 0 : i32
    %7 = vector.broadcast %c0_i32_4 : i32 to vector<1x256xi32>
    %8 = arith.cmpi ne, %6, %7 : vector<1x256xi32>
    %c0_i32_5 = arith.constant 0 : i32
    %9 = vector.broadcast %c0_i32_5 : i32 to vector<1x256xi32>
    %10 = arith.cmpi slt, %6, %9 : vector<1x256xi32>
    %c0_i32_6 = arith.constant 0 : i32
    %11 = arith.cmpi slt, %4, %c0_i32_6 : i32
    %12 = vector.broadcast %11 : i1 to vector<1x256xi1>
    %13 = vector.broadcast %12 : vector<1x256xi1> to vector<1x256xi1>
    %14 = arith.xori %10, %13 : vector<1x256xi1>
    %15 = arith.andi %14, %8 : vector<1x256xi1>
    %16 = vector.broadcast %4 : i32 to vector<1x256xi32>
    %17 = arith.addi %6, %16 : vector<1x256xi32>
    %18 = arith.select %15, %17, %6 : vector<1x256xi1>, vector<1x256xi32>
    %c16_i32_7 = arith.constant 16 : i32
    %19 = vector.broadcast %c16_i32_7 : i32 to vector<1x256xi32>
    %20 = arith.cmpi sge, %2, %19 : vector<1x256xi32>
    %c240_i32 = arith.constant 240 : i32
    %21 = vector.broadcast %c240_i32 : i32 to vector<1x256xi32>
    %22 = arith.cmpi slt, %2, %21 : vector<1x256xi32>
    %c1_i32_8 = arith.constant 1 : i32
    %23 = vector.broadcast %c1_i32_8 : i32 to vector<1x256xi32>
    %24 = arith.cmpi sge, %18, %23 : vector<1x256xi32>
    %c14_i32 = arith.constant 14 : i32
    %25 = vector.broadcast %c14_i32 : i32 to vector<1x256xi32>
    %26 = arith.cmpi sle, %18, %25 : vector<1x256xi32>
    %27 = vector.extract_strided_slice %1 {offsets = [0, 4], sizes = [8, 1], strides = [1, 1]} : vector<8x16xf32> to vector<8x1xf32>
    %28 = vector.shape_cast %27 : vector<8x1xf32> to vector<1x8x1xf32>
    %29 = vector.broadcast %28 : vector<1x8x1xf32> to vector<2x8x256xf32>
    %30 = arith.mulf %0, %29 : vector<2x8x256xf32>
    %31 = arith.andi %20, %24 : vector<1x256xi1>
    %32 = arith.extui %31 : vector<1x256xi1> to vector<1x256xi32>
    %33 = arith.sitofp %32 : vector<1x256xi32> to vector<1x256xf32>
    %34 = vector.extract_strided_slice %1 {offsets = [0, 0], sizes = [8, 1], strides = [1, 1]} : vector<8x16xf32> to vector<8x1xf32>
    %35 = vector.broadcast %33 : vector<1x256xf32> to vector<8x256xf32>
    %36 = vector.broadcast %34 : vector<8x1xf32> to vector<8x256xf32>
    %37 = arith.mulf %35, %36 : vector<8x256xf32>
    %c17_i32 = arith.constant 17 : i32
    %38 = tpu.dynamic_rotate %0 by %c17_i32 dim 2 : vector<2x8x256xf32>, i32 -> vector<2x8x256xf32>
    %39 = vector.shape_cast %37 : vector<8x256xf32> to vector<1x8x256xf32>
    %40 = vector.broadcast %39 : vector<1x8x256xf32> to vector<2x8x256xf32>
    %41 = arith.mulf %38, %40 : vector<2x8x256xf32>
    %42 = arith.addf %30, %41 : vector<2x8x256xf32>
    %43 = arith.extui %20 : vector<1x256xi1> to vector<1x256xi32>
    %44 = arith.sitofp %43 : vector<1x256xi32> to vector<1x256xf32>
    %45 = vector.extract_strided_slice %1 {offsets = [0, 1], sizes = [8, 1], strides = [1, 1]} : vector<8x16xf32> to vector<8x1xf32>
    %46 = vector.broadcast %44 : vector<1x256xf32> to vector<8x256xf32>
    %47 = vector.broadcast %45 : vector<8x1xf32> to vector<8x256xf32>
    %48 = arith.mulf %46, %47 : vector<8x256xf32>
    %c16_i32_9 = arith.constant 16 : i32
    %49 = tpu.dynamic_rotate %0 by %c16_i32_9 dim 2 : vector<2x8x256xf32>, i32 -> vector<2x8x256xf32>
    %50 = vector.shape_cast %48 : vector<8x256xf32> to vector<1x8x256xf32>
    %51 = vector.broadcast %50 : vector<1x8x256xf32> to vector<2x8x256xf32>
    %52 = arith.mulf %49, %51 : vector<2x8x256xf32>
    %53 = arith.addf %42, %52 : vector<2x8x256xf32>
    %54 = arith.andi %20, %26 : vector<1x256xi1>
    %55 = arith.extui %54 : vector<1x256xi1> to vector<1x256xi32>
    %56 = arith.sitofp %55 : vector<1x256xi32> to vector<1x256xf32>
    %57 = vector.extract_strided_slice %1 {offsets = [0, 2], sizes = [8, 1], strides = [1, 1]} : vector<8x16xf32> to vector<8x1xf32>
    %58 = vector.broadcast %56 : vector<1x256xf32> to vector<8x256xf32>
    %59 = vector.broadcast %57 : vector<8x1xf32> to vector<8x256xf32>
    %60 = arith.mulf %58, %59 : vector<8x256xf32>
    %c15_i32 = arith.constant 15 : i32
    %61 = tpu.dynamic_rotate %0 by %c15_i32 dim 2 : vector<2x8x256xf32>, i32 -> vector<2x8x256xf32>
    %62 = vector.shape_cast %60 : vector<8x256xf32> to vector<1x8x256xf32>
    %63 = vector.broadcast %62 : vector<1x8x256xf32> to vector<2x8x256xf32>
    %64 = arith.mulf %61, %63 : vector<2x8x256xf32>
    %65 = arith.addf %53, %64 : vector<2x8x256xf32>
    %66 = arith.extui %24 : vector<1x256xi1> to vector<1x256xi32>
    %67 = arith.sitofp %66 : vector<1x256xi32> to vector<1x256xf32>
    %68 = vector.extract_strided_slice %1 {offsets = [0, 3], sizes = [8, 1], strides = [1, 1]} : vector<8x16xf32> to vector<8x1xf32>
    %69 = vector.broadcast %67 : vector<1x256xf32> to vector<8x256xf32>
    %70 = vector.broadcast %68 : vector<8x1xf32> to vector<8x256xf32>
    %71 = arith.mulf %69, %70 : vector<8x256xf32>
    %c1_i32_10 = arith.constant 1 : i32
    %72 = tpu.dynamic_rotate %0 by %c1_i32_10 dim 2 : vector<2x8x256xf32>, i32 -> vector<2x8x256xf32>
    %73 = vector.shape_cast %71 : vector<8x256xf32> to vector<1x8x256xf32>
    %74 = vector.broadcast %73 : vector<1x8x256xf32> to vector<2x8x256xf32>
    %75 = arith.mulf %72, %74 : vector<2x8x256xf32>
    %76 = arith.addf %65, %75 : vector<2x8x256xf32>
    %77 = arith.extui %26 : vector<1x256xi1> to vector<1x256xi32>
    %78 = arith.sitofp %77 : vector<1x256xi32> to vector<1x256xf32>
    %79 = vector.extract_strided_slice %1 {offsets = [0, 5], sizes = [8, 1], strides = [1, 1]} : vector<8x16xf32> to vector<8x1xf32>
    %80 = vector.broadcast %78 : vector<1x256xf32> to vector<8x256xf32>
    %81 = vector.broadcast %79 : vector<8x1xf32> to vector<8x256xf32>
    %82 = arith.mulf %80, %81 : vector<8x256xf32>
    %c255_i32 = arith.constant 255 : i32
    %83 = tpu.dynamic_rotate %0 by %c255_i32 dim 2 : vector<2x8x256xf32>, i32 -> vector<2x8x256xf32>
    %84 = vector.shape_cast %82 : vector<8x256xf32> to vector<1x8x256xf32>
    %85 = vector.broadcast %84 : vector<1x8x256xf32> to vector<2x8x256xf32>
    %86 = arith.mulf %83, %85 : vector<2x8x256xf32>
    %87 = arith.addf %76, %86 : vector<2x8x256xf32>
    %88 = arith.andi %22, %24 : vector<1x256xi1>
    %89 = arith.extui %88 : vector<1x256xi1> to vector<1x256xi32>
    %90 = arith.sitofp %89 : vector<1x256xi32> to vector<1x256xf32>
    %91 = vector.extract_strided_slice %1 {offsets = [0, 6], sizes = [8, 1], strides = [1, 1]} : vector<8x16xf32> to vector<8x1xf32>
    %92 = vector.broadcast %90 : vector<1x256xf32> to vector<8x256xf32>
    %93 = vector.broadcast %91 : vector<8x1xf32> to vector<8x256xf32>
    %94 = arith.mulf %92, %93 : vector<8x256xf32>
    %c241_i32 = arith.constant 241 : i32
    %95 = tpu.dynamic_rotate %0 by %c241_i32 dim 2 : vector<2x8x256xf32>, i32 -> vector<2x8x256xf32>
    %96 = vector.shape_cast %94 : vector<8x256xf32> to vector<1x8x256xf32>
    %97 = vector.broadcast %96 : vector<1x8x256xf32> to vector<2x8x256xf32>
    %98 = arith.mulf %95, %97 : vector<2x8x256xf32>
    %99 = arith.addf %87, %98 : vector<2x8x256xf32>
    %100 = arith.extui %22 : vector<1x256xi1> to vector<1x256xi32>
    %101 = arith.sitofp %100 : vector<1x256xi32> to vector<1x256xf32>
    %102 = vector.extract_strided_slice %1 {offsets = [0, 7], sizes = [8, 1], strides = [1, 1]} : vector<8x16xf32> to vector<8x1xf32>
    %103 = vector.broadcast %101 : vector<1x256xf32> to vector<8x256xf32>
    %104 = vector.broadcast %102 : vector<8x1xf32> to vector<8x256xf32>
    %105 = arith.mulf %103, %104 : vector<8x256xf32>
    %c240_i32_11 = arith.constant 240 : i32
    %106 = tpu.dynamic_rotate %0 by %c240_i32_11 dim 2 : vector<2x8x256xf32>, i32 -> vector<2x8x256xf32>
    %107 = vector.shape_cast %105 : vector<8x256xf32> to vector<1x8x256xf32>
    %108 = vector.broadcast %107 : vector<1x8x256xf32> to vector<2x8x256xf32>
    %109 = arith.mulf %106, %108 : vector<2x8x256xf32>
    %110 = arith.addf %99, %109 : vector<2x8x256xf32>
    %111 = arith.andi %22, %26 : vector<1x256xi1>
    %112 = arith.extui %111 : vector<1x256xi1> to vector<1x256xi32>
    %113 = arith.sitofp %112 : vector<1x256xi32> to vector<1x256xf32>
    %114 = vector.extract_strided_slice %1 {offsets = [0, 8], sizes = [8, 1], strides = [1, 1]} : vector<8x16xf32> to vector<8x1xf32>
    %115 = vector.broadcast %113 : vector<1x256xf32> to vector<8x256xf32>
    %116 = vector.broadcast %114 : vector<8x1xf32> to vector<8x256xf32>
    %117 = arith.mulf %115, %116 : vector<8x256xf32>
    %c239_i32 = arith.constant 239 : i32
    %118 = tpu.dynamic_rotate %0 by %c239_i32 dim 2 : vector<2x8x256xf32>, i32 -> vector<2x8x256xf32>
    %119 = vector.shape_cast %117 : vector<8x256xf32> to vector<1x8x256xf32>
    %120 = vector.broadcast %119 : vector<1x8x256xf32> to vector<2x8x256xf32>
    %121 = arith.mulf %118, %120 : vector<2x8x256xf32>
    %122 = arith.addf %110, %121 : vector<2x8x256xf32>
    %cst = arith.constant dense<0.000000e+00> : vector<8xf32>
    %123 = vector.multi_reduction <add>, %122, %cst [0, 2] : vector<2x8x256xf32> to vector<8xf32>
    %124 = vector.shape_cast %123 : vector<8xf32> to vector<1x8x1xf32>
    %cst_12 = arith.constant 0.001953125 : f32
    %125 = vector.broadcast %cst_12 : f32 to vector<1x8x1xf32>
    %126 = arith.mulf %124, %125 : vector<1x8x1xf32>
    %127 = vector.broadcast %126 : vector<1x8x1xf32> to vector<2x8x256xf32>
    %128 = arith.subf %122, %127 : vector<2x8x256xf32>
    %129 = arith.mulf %128, %128 : vector<2x8x256xf32>
    %cst_13 = arith.constant dense<0.000000e+00> : vector<8xf32>
    %130 = vector.multi_reduction <add>, %129, %cst_13 [0, 2] : vector<2x8x256xf32> to vector<8xf32>
    %131 = vector.shape_cast %130 : vector<8xf32> to vector<1x8x1xf32>
    %cst_14 = arith.constant 0.001953125 : f32
    %132 = vector.broadcast %cst_14 : f32 to vector<1x8x1xf32>
    %133 = arith.mulf %131, %132 : vector<1x8x1xf32>
    %134 = vector.extract_strided_slice %1 {offsets = [0, 9], sizes = [8, 1], strides = [1, 1]} : vector<8x16xf32> to vector<8x1xf32>
    %135 = vector.shape_cast %134 : vector<8x1xf32> to vector<1x8x1xf32>
    %cst_15 = arith.constant 9.99999974E-6 : f32
    %136 = vector.broadcast %cst_15 : f32 to vector<1x8x1xf32>
    %137 = arith.addf %133, %136 : vector<1x8x1xf32>
    %138 = math.rsqrt %137 : vector<1x8x1xf32>
    %139 = arith.mulf %135, %138 : vector<1x8x1xf32>
    %140 = vector.broadcast %139 : vector<1x8x1xf32> to vector<2x8x256xf32>
    %141 = arith.mulf %128, %140 : vector<2x8x256xf32>
    %142 = vector.extract_strided_slice %1 {offsets = [0, 10], sizes = [8, 1], strides = [1, 1]} : vector<8x16xf32> to vector<8x1xf32>
    %143 = vector.shape_cast %142 : vector<8x1xf32> to vector<1x8x1xf32>
    %144 = vector.broadcast %143 : vector<1x8x1xf32> to vector<2x8x256xf32>
    %145 = arith.addf %141, %144 : vector<2x8x256xf32>
    %cst_16 = arith.constant 0.000000e+00 : f32
    %146 = vector.broadcast %cst_16 : f32 to vector<2x8x256xf32>
    %147 = arith.maximumf %145, %146 : vector<2x8x256xf32>
    %c0_17 = arith.constant 0 : index
    %c0_18 = arith.constant 0 : index
    %c0_19 = arith.constant 0 : index
    %148 = vector.load %arg3[%c0_17, %c0_18, %c0_19] : memref<2x8x256xf32, #tpu.memory_space<vmem>>, vector<2x8x256xf32>
    tpu.vector_store %arg3[%c0_17, %c0_18, %c0_19], %147 {strides = array<i32>} : memref<2x8x256xf32, #tpu.memory_space<vmem>>, vector<2x8x256xf32>,
    return
  }
  func.func @transform_0(%arg0: i32) -> (i32, i32, i32) {
    %c0_i32 = arith.constant 0 : i32
    %c0_i32_0 = arith.constant 0 : i32
    %c0_i32_1 = arith.constant 0 : i32
    return %c0_i32, %arg0, %c0_i32_0 : i32, i32, i32
  }
  func.func @transform_1(%arg0: i32) -> (i32, i32) {
    %c0_i32 = arith.constant 0 : i32
    %c0_i32_0 = arith.constant 0 : i32
    return %arg0, %c0_i32 : i32, i32
  }
  func.func @transform_2(%arg0: i32) -> (i32, i32, i32) {
    %c0_i32 = arith.constant 0 : i32
    %c0_i32_0 = arith.constant 0 : i32
    %c0_i32_1 = arith.constant 0 : i32
    return %c0_i32, %arg0, %c0_i32_0 : i32, i32, i32
  }
}

</mosaic_0001>

<llo_original>
// kernel: tpu_custom_call.1
$region0: #{tpu_custom_call.1}
  #allocation0 [shape = 'u32[]', space=smem, size = 0x4, offset = 0x4, fixed_abs, tag = 'smem constant byte address 0x4 - core index']
  #allocation1 [shape = 'u32[144,128]{1,0:T(1,128)}', space=vmem, size = 0x12000, scoped, tag = 'internal scratch']
  %s0 = inlined_call_operand.hbm [shape: f32[2,8,256], index: 0, kind: input, shape index: {}]
  %s1 = inlined_call_operand.hbm [shape: f32[8,16], index: 1, kind: input, shape index: {}]
  %s2 = inlined_call_operand.hbm [shape: f32[2,8,256], index: 2, kind: output, shape index: {}]
  %s3 = sld [smem:[#allocation0]]
  $region26: #{tpu_custom_call.1} parent=0
    _
  %s5 = ssub.s32 1, %s3
  %s6 = scalar_select 0, %s5, %s3
  $region1: #{tpu_custom_call.1} parent=0
    #allocation2 [shape = 'u8[16384]{0}', space=vmem, size = 0x4000, scoped, tag = 'input window, operand 0, single buffered']
    #allocation3 [shape = 's32[1]{0}', space=sflag, size = 0x4, scoped, tag = 'scoped memory for tpu_custom_call.1']
    #allocation4 [shape = 's32[1]{0}', space=sflag, size = 0x4, scoped, tag = 'scoped memory for tpu_custom_call.1']
    #allocation5 [shape = 'u8[4096]{0}', space=vmem, size = 0x1000, scoped, tag = 'input window, operand 1, single buffered']
    #allocation6 [shape = 's32[1]{0}', space=sflag, size = 0x4, scoped, tag = 'scoped memory for tpu_custom_call.1']
    #allocation7 [shape = 'u8[16384]{0}', space=vmem, size = 0x4000, scoped, tag = 'output window, operand 0, single buffered']
    %7 = vsyncpa [#allocation3], 0
    %8 = vsyncpa [#allocation6], 0
    %9 = vsyncpa [#allocation4], 0
    // Predicated region
    $region2: #{tpu_custom_call.1} parent=1 // pred_check
      _
    $region3: #{tpu_custom_call.1} parent=1 // pred_check_branch
      %11 = sbr.rel (0) target = $region5
    $region4: #{tpu_custom_call.1} parent=1 // pred_region
      %s13 = ssub.s32 512, 512
      %14 = vsyncadd [#allocation3], %s13
      %s15 = sshll.u32 [#allocation2], 4
      %s16 = int_to_ptr.vmem [resolvable:$true] %s15
      %21 = dma.hbm_to_vmem [thread:$0]  %s0, 512, %s16, [#allocation3], 256, 256, 16
    $region5: #{tpu_custom_call.1} parent=1 // pred_fallthru
      _
    // Predicated region
    $region6: #{tpu_custom_call.1} parent=1 // pred_check
      _
    $region7: #{tpu_custom_call.1} parent=1 // pred_check_branch
      %23 = sbr.rel (0) target = $region9
    $region8: #{tpu_custom_call.1} parent=1 // pred_region
      %s25 = ssub.s32 128, 128
      %26 = vsyncadd [#allocation6], %s25
      %s28 = sshll.u32 [#allocation5], 4
      %s29 = int_to_ptr.vmem [resolvable:$true] %s28
      %31 = dma.hbm_to_vmem [thread:$0]  %s1, 128, %s29, [#allocation6]
    $region9: #{tpu_custom_call.1} parent=1 // pred_fallthru
      _
    // Predicated region
    $region10: #{tpu_custom_call.1} parent=1 // pred_check
      _
    $region11: #{tpu_custom_call.1} parent=1 // pred_check_branch
      %33 = sbr.rel (0) target = $region13
    $region12: #{tpu_custom_call.1} parent=1 // pred_region
      %34 = dma.done [#allocation3], 512
    $region13: #{tpu_custom_call.1} parent=1 // pred_fallthru
      _
    // Predicated region
    $region14: #{tpu_custom_call.1} parent=1 // pred_check
      _
    $region15: #{tpu_custom_call.1} parent=1 // pred_check_branch
      %36 = sbr.rel (0) target = $region17
    $region16: #{tpu_custom_call.1} parent=1 // pred_region
      %37 = dma.done [#allocation6], 128
    $region17: #{tpu_custom_call.1} parent=1 // pred_fallthru
      _
    %v38 = vld [vmem:[#allocation2] sm:$0xff]
    %v39 = vld [vmem:[#allocation2 + $0x8] sm:$0xff]
    %v40 = vld [vmem:[#allocation2 + $0x10] sm:$0xff]
    %v41 = vld [vmem:[#allocation2 + $0x18] sm:$0xff]
    %v42 = vld [vmem:[#allocation5] sm:$0xff]
    %v43 = vlaneseq
    %v44 = vand.u32 %v43, 127
    %v45 = vadd.s32 %v44, 128
    %vm46 = vcmp.lt.s32.totalorder %v44, 0
    %v47 = vsub.s32 0, %v44
    %v48 = vsel %vm46, %v47, %v44
    %v49 = vshrl.u32 %v48, 4
    %v50 = vand.u32 %v48, 15
    %v51 = vsub.s32 0, %v50
    %v52 = vsel %vm46, %v51, %v50
    %vm53 = vcmp.lt.s32.totalorder %v45, 0
    %v54 = vsub.s32 0, %v45
    %v55 = vsel %vm53, %v54, %v45
    %v56 = vshrl.u32 %v55, 4
    %v57 = vand.u32 %v55, 15
    %v58 = vsub.s32 0, %v57
    %v59 = vsel %vm53, %v58, %v57
    %vm60 = vcmp.ne.s32.totalorder %v52, 0
    %vm61 = vcmp.ne.s32.totalorder %v59, 0
    %vm62 = vcmp.lt.s32.totalorder %v52, 0
    %vm63 = vcmp.lt.s32.totalorder %v59, 0
    %vm64 = vmand %vm62, %vm60
    %vm65 = vmand %vm63, %vm61
    %v66 = vadd.s32 %v52, 16
    %v67 = vadd.s32 %v59, 16
    %v68 = vsel %vm64, %v66, %v52
    %v69 = vsel %vm65, %v67, %v59
    %vm70 = vcmp.ge.s32.totalorder %v44, 16
    %vm71 = vcmp.ge.s32.totalorder %v45, 16
    %vm72 = vcmp.lt.s32.totalorder %v44, 240
    %vm73 = vcmp.lt.s32.totalorder %v45, 240
    %vm74 = vcmp.ge.s32.totalorder %v68, 1
    %vm75 = vcmp.ge.s32.totalorder %v69, 1
    %vm76 = vcmp.le.s32.totalorder %v68, 14
    %vm77 = vcmp.le.s32.totalorder %v69, 14
    %79 = vset.pattern.permute.xlu0 4
    %80 = vperm.xlu0 %79, %v42
    %v81 = vpop.permute.xlu0 %80
    %v83 = vmul.f32 %v38, %v81
    %v84 = vmul.f32 %v39, %v81
    %v85 = vmul.f32 %v40, %v81
    %v86 = vmul.f32 %v41, %v81
    %vm87 = vmand %vm70, %vm74
    %vm88 = vmand %vm71, %vm75
    %v89 = vsel %vm87, 1, 0
    %v90 = vsel %vm88, 1, 0
    %v91 = vcvt.s32.f32 %v89
    %v92 = vcvt.s32.f32 %v90
    %93 = vset.pattern.permute.xlu0 0
    %94 = vperm.xlu0 %93, %v42
    %v95 = vpop.permute.xlu0 %94
    %v97 = vmul.f32 %v91, %v95
    %v98 = vmul.f32 %v92, %v95
    %99 = vrot.lane.b32.xlu0 %v38, 17
    %v100 = vpop.permute.xlu0 %99
    %101 = vrot.lane.b32.xlu0 %v40, 17
    %v102 = vpop.permute.xlu0 %101
    %103 = vrot.lane.b32.xlu0 %v39, 17
    %v104 = vpop.permute.xlu0 %103
    %105 = vrot.lane.b32.xlu0 %v41, 17
    %v106 = vpop.permute.xlu0 %105
    %vm107 = vcmp.lt.s32.totalorder %v44, 17
    %v108 = vsel %vm107, %v100, %v104
    %v109 = vsel %vm107, %v102, %v106
    %v110 = vsel %vm107, %v104, %v100
    %v111 = vsel %vm107, %v106, %v102
    %v112 = vmul.f32 %v110, %v97
    %v113 = vmul.f32 %v108, %v98
    %v114 = vmul.f32 %v111, %v97
    %v115 = vmul.f32 %v109, %v98
    %v116 = vadd.f32 %v83, %v112
    %v117 = vadd.f32 %v84, %v113
    %v118 = vadd.f32 %v85, %v114
    %v119 = vadd.f32 %v86, %v115
    %v120 = vsel %vm70, 1, 0
    %v121 = vsel %vm71, 1, 0
    %v122 = vcvt.s32.f32 %v120
    %v123 = vcvt.s32.f32 %v121
    %124 = vset.pattern.permute.xlu0 1
    %125 = vperm.xlu0 %124, %v42
    %v126 = vpop.permute.xlu0 %125
    %v128 = vmul.f32 %v122, %v126
    %v129 = vmul.f32 %v123, %v126
    %130 = vrot.lane.b32.xlu0 %v38, 16
    %v131 = vpop.permute.xlu0 %130
    %132 = vrot.lane.b32.xlu0 %v40, 16
    %v133 = vpop.permute.xlu0 %132
    %134 = vrot.lane.b32.xlu0 %v39, 16
    %v135 = vpop.permute.xlu0 %134
    %136 = vrot.lane.b32.xlu0 %v41, 16
    %v137 = vpop.permute.xlu0 %136
    %vm138 = vcmp.lt.s32.totalorder %v44, 16
    %v139 = vsel %vm138, %v131, %v135
    %v140 = vsel %vm138, %v133, %v137
    %v141 = vsel %vm138, %v135, %v131
    %v142 = vsel %vm138, %v137, %v133
    %v143 = vmul.f32 %v141, %v128
    %v144 = vmul.f32 %v139, %v129
    %v145 = vmul.f32 %v142, %v128
    %v146 = vmul.f32 %v140, %v129
    %v147 = vadd.f32 %v116, %v143
    %v148 = vadd.f32 %v117, %v144
    %v149 = vadd.f32 %v118, %v145
    %v150 = vadd.f32 %v119, %v146
    %vm151 = vmand %vm70, %vm76
    %vm152 = vmand %vm71, %vm77
    %v153 = vsel %vm151, 1, 0
    %v154 = vsel %vm152, 1, 0
    %v155 = vcvt.s32.f32 %v153
    %v156 = vcvt.s32.f32 %v154
    %157 = vset.pattern.permute.xlu0 2
    %158 = vperm.xlu0 %157, %v42
    %v159 = vpop.permute.xlu0 %158
    %v161 = vmul.f32 %v155, %v159
    %v162 = vmul.f32 %v156, %v159
    %163 = vrot.lane.b32.xlu0 %v38, 15
    %v164 = vpop.permute.xlu0 %163
    %165 = vrot.lane.b32.xlu0 %v40, 15
    %v166 = vpop.permute.xlu0 %165
    %167 = vrot.lane.b32.xlu0 %v39, 15
    %v168 = vpop.permute.xlu0 %167
    %169 = vrot.lane.b32.xlu0 %v41, 15
    %v170 = vpop.permute.xlu0 %169
    %vm171 = vcmp.lt.s32.totalorder %v44, 15
    %v172 = vsel %vm171, %v164, %v168
    %v173 = vsel %vm171, %v166, %v170
    %v174 = vsel %vm171, %v168, %v164
    %v175 = vsel %vm171, %v170, %v166
    %v176 = vmul.f32 %v174, %v161
    %v177 = vmul.f32 %v172, %v162
    %v178 = vmul.f32 %v175, %v161
    %v179 = vmul.f32 %v173, %v162
    %v180 = vadd.f32 %v147, %v176
    %v181 = vadd.f32 %v148, %v177
    %v182 = vadd.f32 %v149, %v178
    %v183 = vadd.f32 %v150, %v179
    %v184 = vsel %vm74, 1, 0
    %v185 = vsel %vm75, 1, 0
    %v186 = vcvt.s32.f32 %v184
    %v187 = vcvt.s32.f32 %v185
    %188 = vset.pattern.permute.xlu0 3
    %189 = vperm.xlu0 %188, %v42
    %v190 = vpop.permute.xlu0 %189
    %v192 = vmul.f32 %v186, %v190
    %v193 = vmul.f32 %v187, %v190
    %194 = vrot.lane.b32.xlu0 %v38, 1
    %v195 = vpop.permute.xlu0 %194
    %196 = vrot.lane.b32.xlu0 %v40, 1
    %v197 = vpop.permute.xlu0 %196
    %198 = vrot.lane.b32.xlu0 %v39, 1
    %v199 = vpop.permute.xlu0 %198
    %200 = vrot.lane.b32.xlu0 %v41, 1
    %v201 = vpop.permute.xlu0 %200
    %vm202 = vcmp.lt.s32.totalorder %v44, 1
    %v203 = vsel %vm202, %v195, %v199
    %v204 = vsel %vm202, %v197, %v201
    %v205 = vsel %vm202, %v199, %v195
    %v206 = vsel %vm202, %v201, %v197
    %v207 = vmul.f32 %v205, %v192
    %v208 = vmul.f32 %v203, %v193
    %v209 = vmul.f32 %v206, %v192
    %v210 = vmul.f32 %v204, %v193
    %v211 = vadd.f32 %v180, %v207
    %v212 = vadd.f32 %v181, %v208
    %v213 = vadd.f32 %v182, %v209
    %v214 = vadd.f32 %v183, %v210
    %v215 = vsel %vm76, 1, 0
    %v216 = vsel %vm77, 1, 0
    %v217 = vcvt.s32.f32 %v215
    %v218 = vcvt.s32.f32 %v216
    %219 = vset.pattern.permute.xlu0 5
    %220 = vperm.xlu0 %219, %v42
    %v221 = vpop.permute.xlu0 %220
    %v223 = vmul.f32 %v217, %v221
    %v224 = vmul.f32 %v218, %v221
    %225 = vrot.lane.b32.xlu0 %v38, 127
    %v226 = vpop.permute.xlu0 %225
    %227 = vrot.lane.b32.xlu0 %v40, 127
    %v228 = vpop.permute.xlu0 %227
    %229 = vrot.lane.b32.xlu0 %v39, 127
    %v230 = vpop.permute.xlu0 %229
    %231 = vrot.lane.b32.xlu0 %v41, 127
    %v232 = vpop.permute.xlu0 %231
    %vm233 = vcmp.lt.s32.totalorder %v44, 127
    %v234 = vsel %vm233, %v226, %v230
    %v235 = vsel %vm233, %v228, %v232
    %v236 = vsel %vm233, %v230, %v226
    %v237 = vsel %vm233, %v232, %v228
    %v238 = vmul.f32 %v234, %v223
    %v239 = vmul.f32 %v236, %v224
    %v240 = vmul.f32 %v235, %v223
    %v241 = vmul.f32 %v237, %v224
    %v242 = vadd.f32 %v211, %v238
    %v243 = vadd.f32 %v212, %v239
    %v244 = vadd.f32 %v213, %v240
    %v245 = vadd.f32 %v214, %v241
    %vm246 = vmand %vm72, %vm74
    %vm247 = vmand %vm73, %vm75
    %v248 = vsel %vm246, 1, 0
    %v249 = vsel %vm247, 1, 0
    %v250 = vcvt.s32.f32 %v248
    %v251 = vcvt.s32.f32 %v249
    %252 = vset.pattern.permute.xlu0 6
    %253 = vperm.xlu0 %252, %v42
    %v254 = vpop.permute.xlu0 %253
    %v256 = vmul.f32 %v250, %v254
    %v257 = vmul.f32 %v251, %v254
    %258 = vrot.lane.b32.xlu0 %v38, 113
    %v259 = vpop.permute.xlu0 %258
    %260 = vrot.lane.b32.xlu0 %v40, 113
    %v261 = vpop.permute.xlu0 %260
    %262 = vrot.lane.b32.xlu0 %v39, 113
    %v263 = vpop.permute.xlu0 %262
    %264 = vrot.lane.b32.xlu0 %v41, 113
    %v265 = vpop.permute.xlu0 %264
    %vm266 = vcmp.lt.s32.totalorder %v44, 113
    %v267 = vsel %vm266, %v259, %v263
    %v268 = vsel %vm266, %v261, %v265
    %v269 = vsel %vm266, %v263, %v259
    %v270 = vsel %vm266, %v265, %v261
    %v271 = vmul.f32 %v267, %v256
    %v272 = vmul.f32 %v269, %v257
    %v273 = vmul.f32 %v268, %v256
    %v274 = vmul.f32 %v270, %v257
    %v275 = vadd.f32 %v242, %v271
    %v276 = vadd.f32 %v243, %v272
    %v277 = vadd.f32 %v244, %v273
    %v278 = vadd.f32 %v245, %v274
    %v279 = vsel %vm72, 1, 0
    %v280 = vsel %vm73, 1, 0
    %v281 = vcvt.s32.f32 %v279
    %v282 = vcvt.s32.f32 %v280
    %283 = vset.pattern.permute.xlu0 7
    %284 = vperm.xlu0 %283, %v42
    %v285 = vpop.permute.xlu0 %284
    %v287 = vmul.f32 %v281, %v285
    %v288 = vmul.f32 %v282, %v285
    %289 = vrot.lane.b32.xlu0 %v38, 112
    %v290 = vpop.permute.xlu0 %289
    %291 = vrot.lane.b32.xlu0 %v40, 112
    %v292 = vpop.permute.xlu0 %291
    %293 = vrot.lane.b32.xlu0 %v39, 112
    %v294 = vpop.permute.xlu0 %293
    %295 = vrot.lane.b32.xlu0 %v41, 112
    %v296 = vpop.permute.xlu0 %295
    %vm297 = vcmp.lt.s32.totalorder %v44, 112
    %v298 = vsel %vm297, %v290, %v294
    %v299 = vsel %vm297, %v292, %v296
    %v300 = vsel %vm297, %v294, %v290
    %v301 = vsel %vm297, %v296, %v292
    %v302 = vmul.f32 %v298, %v287
    %v303 = vmul.f32 %v300, %v288
    %v304 = vmul.f32 %v299, %v287
    %v305 = vmul.f32 %v301, %v288
    %v306 = vadd.f32 %v275, %v302
    %v307 = vadd.f32 %v276, %v303
    %v308 = vadd.f32 %v277, %v304
    %v309 = vadd.f32 %v278, %v305
    %vm310 = vmand %vm72, %vm76
    %vm311 = vmand %vm73, %vm77
    %v312 = vsel %vm310, 1, 0
    %v313 = vsel %vm311, 1, 0
    %v314 = vcvt.s32.f32 %v312
    %v315 = vcvt.s32.f32 %v313
    %316 = vset.pattern.permute.xlu0 8
    %317 = vperm.xlu0 %316, %v42
    %v318 = vpop.permute.xlu0 %317
    %v320 = vmul.f32 %v314, %v318
    %v321 = vmul.f32 %v315, %v318
    %322 = vrot.lane.b32.xlu0 %v38, 111
    %v323 = vpop.permute.xlu0 %322
    %324 = vrot.lane.b32.xlu0 %v40, 111
    %v325 = vpop.permute.xlu0 %324
    %326 = vrot.lane.b32.xlu0 %v39, 111
    %v327 = vpop.permute.xlu0 %326
    %328 = vrot.lane.b32.xlu0 %v41, 111
    %v329 = vpop.permute.xlu0 %328
    %vm330 = vcmp.lt.s32.totalorder %v44, 111
    %v331 = vsel %vm330, %v323, %v327
    %v332 = vsel %vm330, %v325, %v329
    %v333 = vsel %vm330, %v327, %v323
    %v334 = vsel %vm330, %v329, %v325
    %v335 = vmul.f32 %v331, %v320
    %v336 = vmul.f32 %v333, %v321
    %v337 = vmul.f32 %v332, %v320
    %v338 = vmul.f32 %v334, %v321
    %v339 = vadd.f32 %v306, %v335
    %v340 = vadd.f32 %v307, %v336
    %v341 = vadd.f32 %v308, %v337
    %v342 = vadd.f32 %v309, %v338
    %v343 = vadd.f32 %v339, %v340
    %v344 = vadd.f32 %v343, %v341
    %v345 = vadd.f32 %v344, %v342
    %346 = vadd.xlane.f32.xlu0 %v345
    %v347 = vpop.xlane.xlu0 %346
    %v348 = vmul.f32 %v347, 0.001953125
    %v349 = vsub.f32 %v339, %v348
    %v350 = vsub.f32 %v340, %v348
    %v351 = vsub.f32 %v341, %v348
    %v352 = vsub.f32 %v342, %v348
    %v353 = vmul.f32 %v349, %v349
    %v354 = vmul.f32 %v350, %v350
    %v355 = vmul.f32 %v351, %v351
    %v356 = vmul.f32 %v352, %v352
    %v357 = vadd.f32 %v353, %v354
    %v358 = vadd.f32 %v357, %v355
    %v359 = vadd.f32 %v358, %v356
    %360 = vadd.xlane.f32.xlu0 %v359
    %v361 = vpop.xlane.xlu0 %360
    %v362 = vmul.f32 %v361, 0.001953125
    %v363 = vadd.f32 %v362, 1e-05
    %v364 = vrsqrt.pop %v363
    %v365 = vmul.f32 %v42, %v364
    %367 = vset.pattern.permute.xlu0 9
    %368 = vperm.xlu0 %367, %v365
    %v369 = vpop.permute.xlu0 %368
    %v371 = vmul.f32 %v349, %v369
    %v372 = vmul.f32 %v350, %v369
    %v373 = vmul.f32 %v351, %v369
    %v374 = vmul.f32 %v352, %v369
    %375 = vset.pattern.permute.xlu0 10
    %376 = vperm.xlu0 %375, %v42
    %v377 = vpop.permute.xlu0 %376
    %v379 = vadd.f32 %v371, %v377
    %v380 = vadd.f32 %v372, %v377
    %v381 = vadd.f32 %v373, %v377
    %v382 = vadd.f32 %v374, %v377
    %v383 = vmax.f32 %v379, 0.0
    %v384 = vmax.f32 %v380, 0.0
    %v385 = vmax.f32 %v381, 0.0
    %v386 = vmax.f32 %v382, 0.0
    %387 = vst [vmem:[#allocation7] sm:$0xff] %v383
    %388 = vst [vmem:[#allocation7 + $0x8] sm:$0xff] %v384
    %389 = vst [vmem:[#allocation7 + $0x10] sm:$0xff] %v385
    %390 = vst [vmem:[#allocation7 + $0x18] sm:$0xff] %v386
    // Predicated region
    $region18: #{tpu_custom_call.1} parent=1 // pred_check
      _
    $region19: #{tpu_custom_call.1} parent=1 // pred_check_branch
      %392 = sbr.rel (0) target = $region21
    $region20: #{tpu_custom_call.1} parent=1 // pred_region
      %s394 = ssub.s32 512, 512
      %395 = vsyncadd [#allocation4], %s394
      %s396 = sshll.u32 [#allocation7], 4
      %s397 = int_to_ptr.vmem [resolvable:$true] %s396
      %402 = dma.vmem_to_hbm [thread:$0]  %s397, 512, %s2, [#allocation4], 256, 256, 16
    $region21: #{tpu_custom_call.1} parent=1 // pred_fallthru
      _
    // Predicated region
    $region22: #{tpu_custom_call.1} parent=1 // pred_check
      _
    $region23: #{tpu_custom_call.1} parent=1 // pred_check_branch
      %404 = sbr.rel (0) target = $region25
    $region24: #{tpu_custom_call.1} parent=1 // pred_region
      %405 = dma.done [#allocation4], 512
    $region25: #{tpu_custom_call.1} parent=1 // pred_fallthru
      _
    %406 = vsyncpa [#allocation3], 1
    %407 = vsyncpa [#allocation6], 1
    %408 = vsyncpa [#allocation4], 1

</llo_original>
